<compile_context>
chip_gen: v6e
topology: v6e:2x2x1
jax: 0.10.0
libtpu: 0.0.40
codegen_flags: <defaults>
</compile_context>

<pallas_src>
import functools

import jax
import jax.numpy as jnp
from jax.experimental import pallas as pl
from jax.experimental.pallas import tpu as pltpu


_VMEM_BUDGET = 40 * 1024 * 1024  # keep double-buffered tiles + weights under this


def _encoder_kernel(x_ref, w1_ref, b1_ref, w2_ref, b2_ref, o_ref):
    # x_ref  : (TB, p*WD)   lane-packed input tile (p batch rows per packed row)
    # w1_ref : (p*WD, p*H)  block-diagonal first linear weight (VMEM-resident)
    # b1_ref : (1, p*H)     first bias, tiled p times along lanes (f32)
    # w2_ref : (p*H, p*LD)  block-diagonal second linear weight (VMEM-resident)
    # b2_ref : (1, p*LD)    second bias, tiled p times along lanes (f32)
    # o_ref  : (TB, p*LD)   lane-packed output tile
    x = x_ref[...]

    # Linear 1 + LeakyReLU (negative_slope = 0.01, PyTorch default).
    h = jnp.dot(x, w1_ref[...], preferred_element_type=jnp.float32) + b1_ref[...]
    h = jnp.maximum(h, 0.01 * h)  # vmul+vmax instead of cmp+select

    # Linear 2 + Tanh (tanh uses the EUP slot -> effectively free here).
    y = (jnp.dot(h.astype(w2_ref.dtype), w2_ref[...],
                 preferred_element_type=jnp.float32) + b2_ref[...])
    o_ref[...] = jnp.tanh(y).astype(o_ref.dtype)


def _pick_pack_factor(B, WD, LD, max_pack):
    """Largest p (<= max_pack) dividing B that makes the output lane-dense
    (p*LD % 128 == 0), preferring one that also makes the input lane-dense."""
    candidates = [p for p in (8, 4, 2, 1) if p <= max_pack and B % p == 0]
    for p in candidates:
        if (p * LD) % 128 == 0 and (p * WD) % 128 == 0:
            return p
    for p in candidates:
        if (p * LD) % 128 == 0:
            return p
    return 1


def _device_max_pack():
    # v5e: the p-fold block-diagonal expansion multiplies executed MXU FLOPs by p; with
    # its ~5x slower MXU the kernel can flip from mem-bound to MXU-bound, so cap p there.
    try:
        kind = jax.devices()[0].device_kind.lower()
    except Exception:
        return 8
    if "v5 lite" in kind or "v5lite" in kind or "v5e" in kind:
        return 4
    return 8


@functools.partial(
    jax.jit, static_argnames=("block_b", "io_dtype", "out_dtype", "max_pack"))
def watermark_encoder(w, w1, b1, w2, b2, *, block_b=8192, io_dtype=jnp.float32,
                      out_dtype=jnp.float32, max_pack=None):
    B, WD = w.shape
    H = w1.shape[1]
    LD = w2.shape[1]

    if max_pack is None:
        max_pack = _device_max_pack()
    io_dtype = jnp.dtype(io_dtype)
    out_dtype = jnp.dtype(out_dtype)
    # bf16 tiles pack 16 rows per sublane-vreg: round the batch tile to 16 then.
    sub = 16 if (io_dtype.itemsize == 2 or out_dtype.itemsize == 2) else 8

    # --- lane packing (row-major reshapes are free; weights become block-diagonal) ---
    # NOTE: if the weights are static across calls, hoist this packing (the jnp.kron)
    # out of the per-call path and pass the packed params in directly.
    p = _pick_pack_factor(B, WD, LD, max_pack)
    rows = B // p
    x_p = w.reshape(rows, p * WD).astype(io_dtype)
    if p > 1:
        eye = jnp.eye(p, dtype=w1.dtype)
        w1_p = jnp.kron(eye, w1).astype(io_dtype)     # (p*WD, p*H)
        w2_p = jnp.kron(eye, w2).astype(io_dtype)     # (p*H, p*LD)
        b1_p = jnp.tile(b1, (1, p)).astype(jnp.float32)
        b2_p = jnp.tile(b2, (1, p)).astype(jnp.float32)
    else:
        w1_p = w1.astype(io_dtype)
        w2_p = w2.astype(io_dtype)
        b1_p = b1.astype(jnp.float32)
        b2_p = b2.astype(jnp.float32)

    in_b = io_dtype.itemsize
    out_b = out_dtype.itemsize
    w_b = io_dtype.itemsize

    def vmem_est(tb):
        tiles = 2 * tb * p * (WD * in_b + LD * out_b)          # double-buffered in+out
        wgts = (p * WD * p * H + p * H * p * LD) * w_b + (p * H + p * LD) * 4
        return tiles + 2 * wgts

    # --- batch-tile selection ---
    tb_req = max(1, block_b // p)
    if rows <= sub:
        tb = rows                      # full extent (allowed even if not a multiple of sub)
    else:
        tb = max(sub, (min(tb_req, rows) // sub) * sub)
        # v7x megacore: keep >= 2 grid steps so both TensorCores (and their HBM BW) work.
        if tb >= rows and rows >= 2 * sub:
            tb = max(sub, ((rows // 2) // sub) * sub)
        # Respect VMEM (v7x: 32 MiB default scoped / 64 MiB physical).
        while tb > sub and vmem_est(tb) > _VMEM_BUDGET:
            tb = max(sub, ((tb // 2) // sub) * sub)

    grid = (pl.cdiv(rows, tb),)
    vmem_limit = int(min(48 * 1024 * 1024,
                         max(vmem_est(tb) + 4 * 1024 * 1024, 20 * 1024 * 1024)))

    weight_bytes = (p * WD * p * H + p * H * p * LD) * w_b + (p * H + p * LD) * 4
    cost = pl.CostEstimate(
        # Executed MXU flops are p x the useful 2*B*(WD*H + H*LD): the block-diagonal
        # zeros are still multiplied.
        flops=2 * p * B * (WD * H + H * LD),
        transcendentals=B * LD,
        bytes_accessed=B * WD * in_b + B * LD * out_b + weight_bytes,
    )

    out_packed = pl.pallas_call(
        _encoder_kernel,
        out_shape=jax.ShapeDtypeStruct((rows, p * LD), out_dtype),
        grid_spec=pltpu.PrefetchScalarGridSpec(
            num_scalar_prefetch=0,
            grid=grid,
            in_specs=[
                pl.BlockSpec((tb, p * WD), lambda i: (i, 0)),     # packed input tile
                pl.BlockSpec((p * WD, p * H), lambda i: (0, 0)),  # W1 (resident)
                pl.BlockSpec((1, p * H), lambda i: (0, 0)),       # b1 (resident)
                pl.BlockSpec((p * H, p * LD), lambda i: (0, 0)),  # W2 (resident)
                pl.BlockSpec((1, p * LD), lambda i: (0, 0)),      # b2 (resident)
            ],
            out_specs=pl.BlockSpec((tb, p * LD), lambda i: (i, 0)),
        ),
        compiler_params=pltpu.CompilerParams(
            dimension_semantics=("parallel",),
            vmem_limit_bytes=vmem_limit,
        ),
        cost_estimate=cost,
    )(x_p, w1_p, b1_p, w2_p, b2_p)

    return out_packed.reshape(B, LD)


def init_params(key, watermark_dim, latent_dim):
    """Deterministic init mimicking PyTorch nn.Linear default (uniform +/- 1/sqrt(fan_in)).
    Weights are stored as [in_features, out_features] so the kernel computes y = x @ W + b."""
    hidden = latent_dim // 2
    k1, k2, k3, k4 = jax.random.split(key, 4)
    bound1 = 1.0 / jnp.sqrt(watermark_dim)
    bound2 = 1.0 / jnp.sqrt(hidden)
    w1 = jax.random.uniform(k1, (watermark_dim, hidden), jnp.float32, -bound1, bound1)
    b1 = jax.random.uniform(k2, (1, hidden), jnp.float32, -bound1, bound1)
    w2 = jax.random.uniform(k3, (hidden, latent_dim), jnp.float32, -bound2, bound2)
    b2 = jax.random.uniform(k4, (1, latent_dim), jnp.float32, -bound2, bound2)
    return w1, b1, w2, b2


def reference(w, w1, b1, w2, b2):
    h = w @ w1 + b1
    h = jnp.where(h >= 0, h, 0.01 * h)
    return jnp.tanh(h @ w2 + b2)


if __name__ == "__main__":
    watermark_dim = 32
    latent_dim = 64
    batch = 64  # small demo shapes; block_b default (8192) just gives a full-tile grid

    key = jax.random.PRNGKey(0)
    k_in, k_params = jax.random.split(key)
    w = jax.random.normal(k_in, (batch, watermark_dim), jnp.float32)
    w1, b1, w2, b2 = init_params(k_params, watermark_dim, latent_dim)

    out = watermark_encoder(w, w1, b1, w2, b2)
    out = jax.block_until_ready(out)

    ref = reference(w, w1, b1, w2, b2)
    assert out.shape == (batch, latent_dim)
    assert jnp.allclose(out, ref, atol=2e-5, rtol=1e-5)

    print("KERNEL_OK")
</pallas_src>

<mosaic_0001>
module attributes {stable_mosaic.version = 11 : i64} {
  func.func @_encoder_kernel(%arg0: i32, %arg1: memref<8x256xf32, #tpu.memory_space<vmem>>, %arg2: memref<256x256xf32, #tpu.memory_space<vmem>>, %arg3: memref<1x256xf32, #tpu.memory_space<vmem>>, %arg4: memref<256x512xf32, #tpu.memory_space<vmem>>, %arg5: memref<1x512xf32, #tpu.memory_space<vmem>>, %arg6: memref<8x512xf32, #tpu.memory_space<vmem>>) attributes {dimension_semantics = [#tpu.dimension_semantics<parallel>], iteration_bounds = array<i64: 1>, scalar_prefetch = 0 : i64, scratch_operands = 0 : i64, tpu.core_type = #tpu.core_type<tc>, window_params = [{transform_indices = @transform_0, window_bounds = array<i64: 8, 256>}, {pipeline_mode = #tpu.pipeline_mode<synchronous>, transform_indices = @transform_1, window_bounds = array<i64: 256, 256>}, {pipeline_mode = #tpu.pipeline_mode<synchronous>, transform_indices = @transform_2, window_bounds = array<i64: 1, 256>}, {pipeline_mode = #tpu.pipeline_mode<synchronous>, transform_indices = @transform_3, window_bounds = array<i64: 256, 512>}, {pipeline_mode = #tpu.pipeline_mode<synchronous>, transform_indices = @transform_4, window_bounds = array<i64: 1, 512>}, {transform_indices = @transform_5, window_bounds = array<i64: 8, 512>}]} {
    %c0 = arith.constant 0 : index
    %c0_0 = arith.constant 0 : index
    %0 = vector.load %arg1[%c0, %c0_0] : memref<8x256xf32, #tpu.memory_space<vmem>>, vector<8x256xf32>
    %c0_1 = arith.constant 0 : index
    %c0_2 = arith.constant 0 : index
    %1 = vector.load %arg2[%c0_1, %c0_2] : memref<256x256xf32, #tpu.memory_space<vmem>>, vector<256x256xf32>
    %cst = arith.constant dense<0.000000e+00> : vector<8x256xf32>
    %2 = tpu.matmul %0, %1, %cst {dimension_numbers = #tpu.dot_dimension_numbers<[1], [0], [0], [1], [0, 0, 1, 1], [], []>} : vector<8x256xf32>, vector<256x256xf32>, vector<8x256xf32> -> vector<8x256xf32>
    %c0_3 = arith.constant 0 : index
    %c0_4 = arith.constant 0 : index
    %3 = vector.load %arg3[%c0_3, %c0_4] : memref<1x256xf32, #tpu.memory_space<vmem>>, vector<1x256xf32>
    %4 = vector.broadcast %3 : vector<1x256xf32> to vector<8x256xf32>
    %5 = arith.addf %2, %4 : vector<8x256xf32>
    %cst_5 = arith.constant 0.00999999977 : f32
    %6 = vector.broadcast %cst_5 : f32 to vector<8x256xf32>
    %7 = arith.mulf %6, %5 : vector<8x256xf32>
    %8 = arith.maximumf %5, %7 : vector<8x256xf32>
    %c0_6 = arith.constant 0 : index
    %c0_7 = arith.constant 0 : index
    %9 = vector.load %arg4[%c0_6, %c0_7] : memref<256x512xf32, #tpu.memory_space<vmem>>, vector<256x512xf32>
    %cst_8 = arith.constant dense<0.000000e+00> : vector<8x512xf32>
    %10 = tpu.matmul %8, %9, %cst_8 {dimension_numbers = #tpu.dot_dimension_numbers<[1], [0], [0], [1], [0, 0, 1, 1], [], []>} : vector<8x256xf32>, vector<256x512xf32>, vector<8x512xf32> -> vector<8x512xf32>
    %c0_9 = arith.constant 0 : index
    %c0_10 = arith.constant 0 : index
    %11 = vector.load %arg5[%c0_9, %c0_10] : memref<1x512xf32, #tpu.memory_space<vmem>>, vector<1x512xf32>
    %12 = vector.broadcast %11 : vector<1x512xf32> to vector<8x512xf32>
    %13 = arith.addf %10, %12 : vector<8x512xf32>
    %14 = math.tanh %13 : vector<8x512xf32>
    %c0_11 = arith.constant 0 : index
    %c0_12 = arith.constant 0 : index
    %15 = vector.load %arg6[%c0_11, %c0_12] : memref<8x512xf32, #tpu.memory_space<vmem>>, vector<8x512xf32>
    tpu.vector_store %arg6[%c0_11, %c0_12], %14 {strides = array<i32>} : memref<8x512xf32, #tpu.memory_space<vmem>>, vector<8x512xf32>,
    return
  }
  func.func @transform_0(%arg0: i32) -> (i32, i32) {
    %c0_i32 = arith.constant 0 : i32
    %c0_i32_0 = arith.constant 0 : i32
    return %arg0, %c0_i32 : i32, i32
  }
  func.func @transform_1(%arg0: i32) -> (i32, i32) {
    %c0_i32 = arith.constant 0 : i32
    %c0_i32_0 = arith.constant 0 : i32
    %c0_i32_1 = arith.constant 0 : i32
    return %c0_i32, %c0_i32_0 : i32, i32
  }
  func.func @transform_2(%arg0: i32) -> (i32, i32) {
    %c0_i32 = arith.constant 0 : i32
    %c0_i32_0 = arith.constant 0 : i32
    %c0_i32_1 = arith.constant 0 : i32
    return %c0_i32, %c0_i32_0 : i32, i32
  }
  func.func @transform_3(%arg0: i32) -> (i32, i32) {
    %c0_i32 = arith.constant 0 : i32
    %c0_i32_0 = arith.constant 0 : i32
    %c0_i32_1 = arith.constant 0 : i32
    return %c0_i32, %c0_i32_0 : i32, i32
  }
  func.func @transform_4(%arg0: i32) -> (i32, i32) {
    %c0_i32 = arith.constant 0 : i32
    %c0_i32_0 = arith.constant 0 : i32
    %c0_i32_1 = arith.constant 0 : i32
    return %c0_i32, %c0_i32_0 : i32, i32
  }
  func.func @transform_5(%arg0: i32) -> (i32, i32) {
    %c0_i32 = arith.constant 0 : i32
    %c0_i32_0 = arith.constant 0 : i32
    return %arg0, %c0_i32 : i32, i32
  }
}

</mosaic_0001>

<llo_original>
// kernel: watermark_encoder.1
$region0: #{watermark_encoder.1}
  #allocation0 [shape = 'u32[]', space=smem, size = 0x4, offset = 0x4, fixed_abs, tag = 'smem constant byte address 0x4 - core index']
  #allocation1 [shape = 'u32[144,128]{1,0:T(1,128)}', space=vmem, size = 0x12000, scoped, tag = 'internal scratch']
  %s0 = inlined_call_operand.vmem [shape: f32[8,256], index: 0, kind: input, shape index: {}]
  %s1 = inlined_call_operand.vmem [shape: f32[256,256], index: 1, kind: input, shape index: {}]
  %s2 = inlined_call_operand.vmem [shape: f32[1,256], index: 2, kind: input, shape index: {}]
  %s3 = inlined_call_operand.vmem [shape: f32[256,512], index: 3, kind: input, shape index: {}]
  %s4 = inlined_call_operand.vmem [shape: f32[1,512], index: 4, kind: input, shape index: {}]
  %s5 = inlined_call_operand.vmem [shape: f32[8,512], index: 5, kind: output, shape index: {}]
  %s6 = sld [smem:[#allocation0]]
  $region30: #{watermark_encoder.1} parent=0
    _
  %s8 = ssub.s32 1, %s6
  %s9 = scalar_select 0, %s8, %s6
  // Predicated region
  $region2: #{watermark_encoder.1} parent=0 // pred_check
    _
  $region3: #{watermark_encoder.1} parent=0 // pred_check_branch
    %11 = sbr.rel (0) target = $region5
  $region4: #{watermark_encoder.1} parent=0 // pred_region
    _
  $region5: #{watermark_encoder.1} parent=0 // pred_fallthru
    _
  // Predicated region
  $region6: #{watermark_encoder.1} parent=0 // pred_check
    _
  $region7: #{watermark_encoder.1} parent=0 // pred_check_branch
    %13 = sbr.rel (0) target = $region9
  $region8: #{watermark_encoder.1} parent=0 // pred_region
    _
  $region9: #{watermark_encoder.1} parent=0 // pred_fallthru
    _
  // Predicated region
  $region10: #{watermark_encoder.1} parent=0 // pred_check
    _
  $region11: #{watermark_encoder.1} parent=0 // pred_check_branch
    %15 = sbr.rel (0) target = $region13
  $region12: #{watermark_encoder.1} parent=0 // pred_region
    _
  $region13: #{watermark_encoder.1} parent=0 // pred_fallthru
    _
  // Predicated region
  $region14: #{watermark_encoder.1} parent=0 // pred_check
    _
  $region15: #{watermark_encoder.1} parent=0 // pred_check_branch
    %17 = sbr.rel (0) target = $region17
  $region16: #{watermark_encoder.1} parent=0 // pred_region
    _
  $region17: #{watermark_encoder.1} parent=0 // pred_fallthru
    _
  // Predicated region
  $region18: #{watermark_encoder.1} parent=0 // pred_check
    _
  $region19: #{watermark_encoder.1} parent=0 // pred_check_branch
    %19 = sbr.rel (0) target = $region21
  $region20: #{watermark_encoder.1} parent=0 // pred_region
    _
  $region21: #{watermark_encoder.1} parent=0 // pred_fallthru
    _
  %v20 = vld [vmem:[%s0] sm:$0xff]
  %v21 = vld [vmem:[%s0 + $0x8] sm:$0xff]
  %v22 = vld [vmem:[%s1] sm:$0xff]
  %v23 = vld [vmem:[%s1 + $0x8] sm:$0xff]
  %v24 = vld [vmem:[%s1 + $0x10] sm:$0xff]
  %v25 = vld [vmem:[%s1 + $0x18] sm:$0xff]
  %v26 = vld [vmem:[%s1 + $0x20] sm:$0xff]
  %v27 = vld [vmem:[%s1 + $0x28] sm:$0xff]
  %v28 = vld [vmem:[%s1 + $0x30] sm:$0xff]
  %v29 = vld [vmem:[%s1 + $0x38] sm:$0xff]
  %v30 = vld [vmem:[%s1 + $0x40] sm:$0xff]
  %v31 = vld [vmem:[%s1 + $0x48] sm:$0xff]
  %v32 = vld [vmem:[%s1 + $0x50] sm:$0xff]
  %v33 = vld [vmem:[%s1 + $0x58] sm:$0xff]
  %v34 = vld [vmem:[%s1 + $0x60] sm:$0xff]
  %v35 = vld [vmem:[%s1 + $0x68] sm:$0xff]
  %v36 = vld [vmem:[%s1 + $0x70] sm:$0xff]
  %v37 = vld [vmem:[%s1 + $0x78] sm:$0xff]
  %v38 = vld [vmem:[%s1 + $0x80] sm:$0xff]
  %v39 = vld [vmem:[%s1 + $0x88] sm:$0xff]
  %v40 = vld [vmem:[%s1 + $0x90] sm:$0xff]
  %v41 = vld [vmem:[%s1 + $0x98] sm:$0xff]
  %v42 = vld [vmem:[%s1 + $0xa0] sm:$0xff]
  %v43 = vld [vmem:[%s1 + $0xa8] sm:$0xff]
  %v44 = vld [vmem:[%s1 + $0xb0] sm:$0xff]
  %v45 = vld [vmem:[%s1 + $0xb8] sm:$0xff]
  %v46 = vld [vmem:[%s1 + $0xc0] sm:$0xff]
  %v47 = vld [vmem:[%s1 + $0xc8] sm:$0xff]
  %v48 = vld [vmem:[%s1 + $0xd0] sm:$0xff]
  %v49 = vld [vmem:[%s1 + $0xd8] sm:$0xff]
  %v50 = vld [vmem:[%s1 + $0xe0] sm:$0xff]
  %v51 = vld [vmem:[%s1 + $0xe8] sm:$0xff]
  %v52 = vld [vmem:[%s1 + $0xf0] sm:$0xff]
  %v53 = vld [vmem:[%s1 + $0xf8] sm:$0xff]
  %v54 = vld [vmem:[%s1 + $0x100] sm:$0xff]
  %v55 = vld [vmem:[%s1 + $0x108] sm:$0xff]
  %v56 = vld [vmem:[%s1 + $0x110] sm:$0xff]
  %v57 = vld [vmem:[%s1 + $0x118] sm:$0xff]
  %v58 = vld [vmem:[%s1 + $0x120] sm:$0xff]
  %v59 = vld [vmem:[%s1 + $0x128] sm:$0xff]
  %v60 = vld [vmem:[%s1 + $0x130] sm:$0xff]
  %v61 = vld [vmem:[%s1 + $0x138] sm:$0xff]
  %v62 = vld [vmem:[%s1 + $0x140] sm:$0xff]
  %v63 = vld [vmem:[%s1 + $0x148] sm:$0xff]
  %v64 = vld [vmem:[%s1 + $0x150] sm:$0xff]
  %v65 = vld [vmem:[%s1 + $0x158] sm:$0xff]
  %v66 = vld [vmem:[%s1 + $0x160] sm:$0xff]
  %v67 = vld [vmem:[%s1 + $0x168] sm:$0xff]
  %v68 = vld [vmem:[%s1 + $0x170] sm:$0xff]
  %v69 = vld [vmem:[%s1 + $0x178] sm:$0xff]
  %v70 = vld [vmem:[%s1 + $0x180] sm:$0xff]
  %v71 = vld [vmem:[%s1 + $0x188] sm:$0xff]
  %v72 = vld [vmem:[%s1 + $0x190] sm:$0xff]
  %v73 = vld [vmem:[%s1 + $0x198] sm:$0xff]
  %v74 = vld [vmem:[%s1 + $0x1a0] sm:$0xff]
  %v75 = vld [vmem:[%s1 + $0x1a8] sm:$0xff]
  %v76 = vld [vmem:[%s1 + $0x1b0] sm:$0xff]
  %v77 = vld [vmem:[%s1 + $0x1b8] sm:$0xff]
  %v78 = vld [vmem:[%s1 + $0x1c0] sm:$0xff]
  %v79 = vld [vmem:[%s1 + $0x1c8] sm:$0xff]
  %v80 = vld [vmem:[%s1 + $0x1d0] sm:$0xff]
  %v81 = vld [vmem:[%s1 + $0x1d8] sm:$0xff]
  %v82 = vld [vmem:[%s1 + $0x1e0] sm:$0xff]
  %v83 = vld [vmem:[%s1 + $0x1e8] sm:$0xff]
  %v84 = vld [vmem:[%s1 + $0x1f0] sm:$0xff]
  %v85 = vld [vmem:[%s1 + $0x1f8] sm:$0xff]
  %v86 = vld [vmem:[%s2] sm:$0x3]
  %v88 = vlaneseq
  %v89 = vshrl.u32 %v88, 7
  %v90 = vsub.s32 0, %v89
  %v91 = vrot.slane %v86, %v90
  %v92 = vlaneseq
  %v93 = vshrl.u32 %v92, 7
  %v94 = vsub.s32 1, %v93
  %v95 = vrot.slane %v86, %v94
  %98 = vmatprep.subr.mxu0 %v53
  %99 = vmatpush1.msra.mxu0 %v52
  %100 = vmatprep.subr.mxu0 %v51
  %101 = vmatpush1.msra.mxu0 %v50
  %102 = vmatprep.subr.mxu0 %v49
  %103 = vmatpush1.msra.mxu0 %v48
  %104 = vmatprep.subr.mxu0 %v47
  %105 = vmatpush1.msra.mxu0 %v46
  %106 = vmatprep.subr.mxu0 %v45
  %107 = vmatpush1.msra.mxu0 %v44
  %108 = vmatprep.subr.mxu0 %v43
  %109 = vmatpush1.msra.mxu0 %v42
  %110 = vmatprep.subr.mxu0 %v41
  %111 = vmatpush1.msra.mxu0 %v40
  %112 = vmatprep.subr.mxu0 %v39
  %113 = vmatpush1.msra.mxu0 %v38
  %114 = vmatprep.subr.mxu0 %v37
  %115 = vmatpush1.msra.mxu0 %v36
  %116 = vmatprep.subr.mxu0 %v35
  %117 = vmatpush1.msra.mxu0 %v34
  %118 = vmatprep.subr.mxu0 %v33
  %119 = vmatpush1.msra.mxu0 %v32
  %120 = vmatprep.subr.mxu0 %v31
  %121 = vmatpush1.msra.mxu0 %v30
  %122 = vmatprep.subr.mxu0 %v29
  %123 = vmatpush1.msra.mxu0 %v28
  %124 = vmatprep.subr.mxu0 %v27
  %125 = vmatpush1.msra.mxu0 %v26
  %126 = vmatprep.subr.mxu0 %v25
  %127 = vmatpush1.msra.mxu0 %v24
  %128 = vmatprep.subr.mxu0 %v23
  %129 = vmatpush1.msra.mxu0 %v22
  %130 = vmatprep.subr.mxu0 %v85
  %131 = vmatpush2.msra.mxu0 %v84
  %132 = vmatprep.subr.mxu0 %v83
  %133 = vmatpush2.msra.mxu0 %v82
  %134 = vmatprep.subr.mxu0 %v81
  %135 = vmatpush2.msra.mxu0 %v80
  %136 = vmatprep.subr.mxu0 %v79
  %137 = vmatpush2.msra.mxu0 %v78
  %138 = vmatprep.subr.mxu0 %v77
  %139 = vmatpush2.msra.mxu0 %v76
  %140 = vmatprep.subr.mxu0 %v75
  %141 = vmatpush2.msra.mxu0 %v74
  %142 = vmatprep.subr.mxu0 %v73
  %143 = vmatpush2.msra.mxu0 %v72
  %144 = vmatprep.subr.mxu0 %v71
  %145 = vmatpush2.msra.mxu0 %v70
  %146 = vmatprep.subr.mxu0 %v69
  %147 = vmatpush2.msra.mxu0 %v68
  %148 = vmatprep.subr.mxu0 %v67
  %149 = vmatpush2.msra.mxu0 %v66
  %150 = vmatprep.subr.mxu0 %v65
  %151 = vmatpush2.msra.mxu0 %v64
  %152 = vmatprep.subr.mxu0 %v63
  %153 = vmatpush2.msra.mxu0 %v62
  %154 = vmatprep.subr.mxu0 %v61
  %155 = vmatpush2.msra.mxu0 %v60
  %156 = vmatprep.subr.mxu0 %v59
  %157 = vmatpush2.msra.mxu0 %v58
  %158 = vmatprep.subr.mxu0 %v57
  %159 = vmatpush2.msra.mxu0 %v56
  %160 = vmatprep.subr.mxu0 %v55
  %161 = vmatpush2.msra.mxu0 %v54
  %162 = vmatprep.mubr.f32.mxu0 %v21
  %163 = vmatmul.mubr.f32.gmra.mxu0 %v20
  %v164 = vpop.f32.mrf.mxu0
  %v165 = vadd.f32 %v91, %v164
  %v166 = vpop.f32.mrf.mxu0
  %v167 = vadd.f32 %v95, %v166
  %168 = vdwg.mxu0
  %v169 = vmul.f32 %v165, 0.01
  %v170 = vmul.f32 %v167, 0.01
  %v171 = vmax.f32 %v165, %v169
  %v172 = vmax.f32 %v167, %v170
  %v173 = vld [vmem:[%s3] sm:$0xff]
  %v174 = vld [vmem:[%s3 + $0x8] sm:$0xff]
  %v175 = vld [vmem:[%s3 + $0x10] sm:$0xff]
  %v176 = vld [vmem:[%s3 + $0x18] sm:$0xff]
  %v177 = vld [vmem:[%s3 + $0x20] sm:$0xff]
  %v178 = vld [vmem:[%s3 + $0x28] sm:$0xff]
  %v179 = vld [vmem:[%s3 + $0x30] sm:$0xff]
  %v180 = vld [vmem:[%s3 + $0x38] sm:$0xff]
  %v181 = vld [vmem:[%s3 + $0x40] sm:$0xff]
  %v182 = vld [vmem:[%s3 + $0x48] sm:$0xff]
  %v183 = vld [vmem:[%s3 + $0x50] sm:$0xff]
  %v184 = vld [vmem:[%s3 + $0x58] sm:$0xff]
  %v185 = vld [vmem:[%s3 + $0x60] sm:$0xff]
  %v186 = vld [vmem:[%s3 + $0x68] sm:$0xff]
  %v187 = vld [vmem:[%s3 + $0x70] sm:$0xff]
  %v188 = vld [vmem:[%s3 + $0x78] sm:$0xff]
  %v189 = vld [vmem:[%s3 + $0x80] sm:$0xff]
  %v190 = vld [vmem:[%s3 + $0x88] sm:$0xff]
  %v191 = vld [vmem:[%s3 + $0x90] sm:$0xff]
  %v192 = vld [vmem:[%s3 + $0x98] sm:$0xff]
  %v193 = vld [vmem:[%s3 + $0xa0] sm:$0xff]
  %v194 = vld [vmem:[%s3 + $0xa8] sm:$0xff]
  %v195 = vld [vmem:[%s3 + $0xb0] sm:$0xff]
  %v196 = vld [vmem:[%s3 + $0xb8] sm:$0xff]
  %v197 = vld [vmem:[%s3 + $0xc0] sm:$0xff]
  %v198 = vld [vmem:[%s3 + $0xc8] sm:$0xff]
  %v199 = vld [vmem:[%s3 + $0xd0] sm:$0xff]
  %v200 = vld [vmem:[%s3 + $0xd8] sm:$0xff]
  %v201 = vld [vmem:[%s3 + $0xe0] sm:$0xff]
  %v202 = vld [vmem:[%s3 + $0xe8] sm:$0xff]
  %v203 = vld [vmem:[%s3 + $0xf0] sm:$0xff]
  %v204 = vld [vmem:[%s3 + $0xf8] sm:$0xff]
  %v205 = vld [vmem:[%s3 + $0x100] sm:$0xff]
  %v206 = vld [vmem:[%s3 + $0x108] sm:$0xff]
  %v207 = vld [vmem:[%s3 + $0x110] sm:$0xff]
  %v208 = vld [vmem:[%s3 + $0x118] sm:$0xff]
  %v209 = vld [vmem:[%s3 + $0x120] sm:$0xff]
  %v210 = vld [vmem:[%s3 + $0x128] sm:$0xff]
  %v211 = vld [vmem:[%s3 + $0x130] sm:$0xff]
  %v212 = vld [vmem:[%s3 + $0x138] sm:$0xff]
  %v213 = vld [vmem:[%s3 + $0x140] sm:$0xff]
  %v214 = vld [vmem:[%s3 + $0x148] sm:$0xff]
  %v215 = vld [vmem:[%s3 + $0x150] sm:$0xff]
  %v216 = vld [vmem:[%s3 + $0x158] sm:$0xff]
  %v217 = vld [vmem:[%s3 + $0x160] sm:$0xff]
  %v218 = vld [vmem:[%s3 + $0x168] sm:$0xff]
  %v219 = vld [vmem:[%s3 + $0x170] sm:$0xff]
  %v220 = vld [vmem:[%s3 + $0x178] sm:$0xff]
  %v221 = vld [vmem:[%s3 + $0x180] sm:$0xff]
  %v222 = vld [vmem:[%s3 + $0x188] sm:$0xff]
  %v223 = vld [vmem:[%s3 + $0x190] sm:$0xff]
  %v224 = vld [vmem:[%s3 + $0x198] sm:$0xff]
  %v225 = vld [vmem:[%s3 + $0x1a0] sm:$0xff]
  %v226 = vld [vmem:[%s3 + $0x1a8] sm:$0xff]
  %v227 = vld [vmem:[%s3 + $0x1b0] sm:$0xff]
  %v228 = vld [vmem:[%s3 + $0x1b8] sm:$0xff]
  %v229 = vld [vmem:[%s3 + $0x1c0] sm:$0xff]
  %v230 = vld [vmem:[%s3 + $0x1c8] sm:$0xff]
  %v231 = vld [vmem:[%s3 + $0x1d0] sm:$0xff]
  %v232 = vld [vmem:[%s3 + $0x1d8] sm:$0xff]
  %v233 = vld [vmem:[%s3 + $0x1e0] sm:$0xff]
  %v234 = vld [vmem:[%s3 + $0x1e8] sm:$0xff]
  %v235 = vld [vmem:[%s3 + $0x1f0] sm:$0xff]
  %v236 = vld [vmem:[%s3 + $0x1f8] sm:$0xff]
  %v237 = vld [vmem:[%s3 + $0x200] sm:$0xff]
  %v238 = vld [vmem:[%s3 + $0x208] sm:$0xff]
  %v239 = vld [vmem:[%s3 + $0x210] sm:$0xff]
  %v240 = vld [vmem:[%s3 + $0x218] sm:$0xff]
  %v241 = vld [vmem:[%s3 + $0x220] sm:$0xff]
  %v242 = vld [vmem:[%s3 + $0x228] sm:$0xff]
  %v243 = vld [vmem:[%s3 + $0x230] sm:$0xff]
  %v244 = vld [vmem:[%s3 + $0x238] sm:$0xff]
  %v245 = vld [vmem:[%s3 + $0x240] sm:$0xff]
  %v246 = vld [vmem:[%s3 + $0x248] sm:$0xff]
  %v247 = vld [vmem:[%s3 + $0x250] sm:$0xff]
  %v248 = vld [vmem:[%s3 + $0x258] sm:$0xff]
  %v249 = vld [vmem:[%s3 + $0x260] sm:$0xff]
  %v250 = vld [vmem:[%s3 + $0x268] sm:$0xff]
  %v251 = vld [vmem:[%s3 + $0x270] sm:$0xff]
  %v252 = vld [vmem:[%s3 + $0x278] sm:$0xff]
  %v253 = vld [vmem:[%s3 + $0x280] sm:$0xff]
  %v254 = vld [vmem:[%s3 + $0x288] sm:$0xff]
  %v255 = vld [vmem:[%s3 + $0x290] sm:$0xff]
  %v256 = vld [vmem:[%s3 + $0x298] sm:$0xff]
  %v257 = vld [vmem:[%s3 + $0x2a0] sm:$0xff]
  %v258 = vld [vmem:[%s3 + $0x2a8] sm:$0xff]
  %v259 = vld [vmem:[%s3 + $0x2b0] sm:$0xff]
  %v260 = vld [vmem:[%s3 + $0x2b8] sm:$0xff]
  %v261 = vld [vmem:[%s3 + $0x2c0] sm:$0xff]
  %v262 = vld [vmem:[%s3 + $0x2c8] sm:$0xff]
  %v263 = vld [vmem:[%s3 + $0x2d0] sm:$0xff]
  %v264 = vld [vmem:[%s3 + $0x2d8] sm:$0xff]
  %v265 = vld [vmem:[%s3 + $0x2e0] sm:$0xff]
  %v266 = vld [vmem:[%s3 + $0x2e8] sm:$0xff]
  %v267 = vld [vmem:[%s3 + $0x2f0] sm:$0xff]
  %v268 = vld [vmem:[%s3 + $0x2f8] sm:$0xff]
  %v269 = vld [vmem:[%s3 + $0x300] sm:$0xff]
  %v270 = vld [vmem:[%s3 + $0x308] sm:$0xff]
  %v271 = vld [vmem:[%s3 + $0x310] sm:$0xff]
  %v272 = vld [vmem:[%s3 + $0x318] sm:$0xff]
  %v273 = vld [vmem:[%s3 + $0x320] sm:$0xff]
  %v274 = vld [vmem:[%s3 + $0x328] sm:$0xff]
  %v275 = vld [vmem:[%s3 + $0x330] sm:$0xff]
  %v276 = vld [vmem:[%s3 + $0x338] sm:$0xff]
  %v277 = vld [vmem:[%s3 + $0x340] sm:$0xff]
  %v278 = vld [vmem:[%s3 + $0x348] sm:$0xff]
  %v279 = vld [vmem:[%s3 + $0x350] sm:$0xff]
  %v280 = vld [vmem:[%s3 + $0x358] sm:$0xff]
  %v281 = vld [vmem:[%s3 + $0x360] sm:$0xff]
  %v282 = vld [vmem:[%s3 + $0x368] sm:$0xff]
  %v283 = vld [vmem:[%s3 + $0x370] sm:$0xff]
  %v284 = vld [vmem:[%s3 + $0x378] sm:$0xff]
  %v285 = vld [vmem:[%s3 + $0x380] sm:$0xff]
  %v286 = vld [vmem:[%s3 + $0x388] sm:$0xff]
  %v287 = vld [vmem:[%s3 + $0x390] sm:$0xff]
  %v288 = vld [vmem:[%s3 + $0x398] sm:$0xff]
  %v289 = vld [vmem:[%s3 + $0x3a0] sm:$0xff]
  %v290 = vld [vmem:[%s3 + $0x3a8] sm:$0xff]
  %v291 = vld [vmem:[%s3 + $0x3b0] sm:$0xff]
  %v292 = vld [vmem:[%s3 + $0x3b8] sm:$0xff]
  %v293 = vld [vmem:[%s3 + $0x3c0] sm:$0xff]
  %v294 = vld [vmem:[%s3 + $0x3c8] sm:$0xff]
  %v295 = vld [vmem:[%s3 + $0x3d0] sm:$0xff]
  %v296 = vld [vmem:[%s3 + $0x3d8] sm:$0xff]
  %v297 = vld [vmem:[%s3 + $0x3e0] sm:$0xff]
  %v298 = vld [vmem:[%s3 + $0x3e8] sm:$0xff]
  %v299 = vld [vmem:[%s3 + $0x3f0] sm:$0xff]
  %v300 = vld [vmem:[%s3 + $0x3f8] sm:$0xff]
  %v301 = vld [vmem:[%s4] sm:$0xf]
  %v303 = vlaneseq
  %v304 = vshrl.u32 %v303, 7
  %v305 = vsub.s32 0, %v304
  %v306 = vrot.slane %v301, %v305
  %v307 = vlaneseq
  %v308 = vshrl.u32 %v307, 7
  %v309 = vsub.s32 1, %v308
  %v310 = vrot.slane %v301, %v309
  %v311 = vlaneseq
  %v312 = vshrl.u32 %v311, 7
  %v313 = vsub.s32 2, %v312
  %v314 = vrot.slane %v301, %v313
  %v315 = vlaneseq
  %v316 = vshrl.u32 %v315, 7
  %v317 = vsub.s32 3, %v316
  %v318 = vrot.slane %v301, %v317
  %323 = vmatprep.subr.mxu0 %v234
  %324 = vmatpush1.msra.mxu0 %v233
  %325 = vmatprep.subr.mxu0 %v230
  %326 = vmatpush1.msra.mxu0 %v229
  %327 = vmatprep.subr.mxu0 %v226
  %328 = vmatpush1.msra.mxu0 %v225
  %329 = vmatprep.subr.mxu0 %v222
  %330 = vmatpush1.msra.mxu0 %v221
  %331 = vmatprep.subr.mxu0 %v218
  %332 = vmatpush1.msra.mxu0 %v217
  %333 = vmatprep.subr.mxu0 %v214
  %334 = vmatpush1.msra.mxu0 %v213
  %335 = vmatprep.subr.mxu0 %v210
  %336 = vmatpush1.msra.mxu0 %v209
  %337 = vmatprep.subr.mxu0 %v206
  %338 = vmatpush1.msra.mxu0 %v205
  %339 = vmatprep.subr.mxu0 %v202
  %340 = vmatpush1.msra.mxu0 %v201
  %341 = vmatprep.subr.mxu0 %v198
  %342 = vmatpush1.msra.mxu0 %v197
  %343 = vmatprep.subr.mxu0 %v194
  %344 = vmatpush1.msra.mxu0 %v193
  %345 = vmatprep.subr.mxu0 %v190
  %346 = vmatpush1.msra.mxu0 %v189
  %347 = vmatprep.subr.mxu0 %v186
  %348 = vmatpush1.msra.mxu0 %v185
  %349 = vmatprep.subr.mxu0 %v182
  %350 = vmatpush1.msra.mxu0 %v181
  %351 = vmatprep.subr.mxu0 %v178
  %352 = vmatpush1.msra.mxu0 %v177
  %353 = vmatprep.subr.mxu0 %v174
  %354 = vmatpush1.msra.mxu0 %v173
  %355 = vmatprep.subr.mxu0 %v298
  %356 = vmatpush2.msra.mxu0 %v297
  %357 = vmatprep.subr.mxu0 %v294
  %358 = vmatpush2.msra.mxu0 %v293
  %359 = vmatprep.subr.mxu0 %v290
  %360 = vmatpush2.msra.mxu0 %v289
  %361 = vmatprep.subr.mxu0 %v286
  %362 = vmatpush2.msra.mxu0 %v285
  %363 = vmatprep.subr.mxu0 %v282
  %364 = vmatpush2.msra.mxu0 %v281
  %365 = vmatprep.subr.mxu0 %v278
  %366 = vmatpush2.msra.mxu0 %v277
  %367 = vmatprep.subr.mxu0 %v274
  %368 = vmatpush2.msra.mxu0 %v273
  %369 = vmatprep.subr.mxu0 %v270
  %370 = vmatpush2.msra.mxu0 %v269
  %371 = vmatprep.subr.mxu0 %v266
  %372 = vmatpush2.msra.mxu0 %v265
  %373 = vmatprep.subr.mxu0 %v262
  %374 = vmatpush2.msra.mxu0 %v261
  %375 = vmatprep.subr.mxu0 %v258
  %376 = vmatpush2.msra.mxu0 %v257
  %377 = vmatprep.subr.mxu0 %v254
  %378 = vmatpush2.msra.mxu0 %v253
  %379 = vmatprep.subr.mxu0 %v250
  %380 = vmatpush2.msra.mxu0 %v249
  %381 = vmatprep.subr.mxu0 %v246
  %382 = vmatpush2.msra.mxu0 %v245
  %383 = vmatprep.subr.mxu0 %v242
  %384 = vmatpush2.msra.mxu0 %v241
  %385 = vmatprep.subr.mxu0 %v238
  %386 = vmatpush2.msra.mxu0 %v237
  %387 = vmatprep.mubr.f32.mxu0 %v172
  %388 = vmatmul.mubr.f32.gmra.mxu0 %v171
  %v389 = vpop.f32.mrf.mxu0
  %v390 = vadd.f32 %v306, %v389
  %v391 = vpop.f32.mrf.mxu0
  %v392 = vadd.f32 %v310, %v391
  %393 = vdwg.mxu0
  %394 = vmatprep.subr.mxu0 %v236
  %395 = vmatpush1.msra.mxu0 %v235
  %396 = vmatprep.subr.mxu0 %v232
  %397 = vmatpush1.msra.mxu0 %v231
  %398 = vmatprep.subr.mxu0 %v228
  %399 = vmatpush1.msra.mxu0 %v227
  %400 = vmatprep.subr.mxu0 %v224
  %401 = vmatpush1.msra.mxu0 %v223
  %402 = vmatprep.subr.mxu0 %v220
  %403 = vmatpush1.msra.mxu0 %v219
  %404 = vmatprep.subr.mxu0 %v216
  %405 = vmatpush1.msra.mxu0 %v215
  %406 = vmatprep.subr.mxu0 %v212
  %407 = vmatpush1.msra.mxu0 %v211
  %408 = vmatprep.subr.mxu0 %v208
  %409 = vmatpush1.msra.mxu0 %v207
  %410 = vmatprep.subr.mxu0 %v204
  %411 = vmatpush1.msra.mxu0 %v203
  %412 = vmatprep.subr.mxu0 %v200
  %413 = vmatpush1.msra.mxu0 %v199
  %414 = vmatprep.subr.mxu0 %v196
  %415 = vmatpush1.msra.mxu0 %v195
  %416 = vmatprep.subr.mxu0 %v192
  %417 = vmatpush1.msra.mxu0 %v191
  %418 = vmatprep.subr.mxu0 %v188
  %419 = vmatpush1.msra.mxu0 %v187
  %420 = vmatprep.subr.mxu0 %v184
  %421 = vmatpush1.msra.mxu0 %v183
  %422 = vmatprep.subr.mxu0 %v180
  %423 = vmatpush1.msra.mxu0 %v179
  %424 = vmatprep.subr.mxu0 %v176
  %425 = vmatpush1.msra.mxu0 %v175
  %426 = vmatprep.subr.mxu0 %v300
  %427 = vmatpush2.msra.mxu0 %v299
  %428 = vmatprep.subr.mxu0 %v296
  %429 = vmatpush2.msra.mxu0 %v295
  %430 = vmatprep.subr.mxu0 %v292
  %431 = vmatpush2.msra.mxu0 %v291
  %432 = vmatprep.subr.mxu0 %v288
  %433 = vmatpush2.msra.mxu0 %v287
  %434 = vmatprep.subr.mxu0 %v284
  %435 = vmatpush2.msra.mxu0 %v283
  %436 = vmatprep.subr.mxu0 %v280
  %437 = vmatpush2.msra.mxu0 %v279
  %438 = vmatprep.subr.mxu0 %v276
  %439 = vmatpush2.msra.mxu0 %v275
  %440 = vmatprep.subr.mxu0 %v272
  %441 = vmatpush2.msra.mxu0 %v271
  %442 = vmatprep.subr.mxu0 %v268
  %443 = vmatpush2.msra.mxu0 %v267
  %444 = vmatprep.subr.mxu0 %v264
  %445 = vmatpush2.msra.mxu0 %v263
  %446 = vmatprep.subr.mxu0 %v260
  %447 = vmatpush2.msra.mxu0 %v259
  %448 = vmatprep.subr.mxu0 %v256
  %449 = vmatpush2.msra.mxu0 %v255
  %450 = vmatprep.subr.mxu0 %v252
  %451 = vmatpush2.msra.mxu0 %v251
  %452 = vmatprep.subr.mxu0 %v248
  %453 = vmatpush2.msra.mxu0 %v247
  %454 = vmatprep.subr.mxu0 %v244
  %455 = vmatpush2.msra.mxu0 %v243
  %456 = vmatprep.subr.mxu0 %v240
  %457 = vmatpush2.msra.mxu0 %v239
  %458 = vmatprep.mubr.f32.mxu0 %v172
  %459 = vmatmul.mubr.f32.gmra.mxu0 %v171
  %v460 = vpop.f32.mrf.mxu0
  %v461 = vadd.f32 %v314, %v460
  %v462 = vpop.f32.mrf.mxu0
  %v463 = vadd.f32 %v318, %v462
  %464 = vdwg.mxu0
  %v465 = vtanh.pop %v390
  %v466 = vtanh.pop %v392
  %v467 = vtanh.pop %v461
  %v468 = vtanh.pop %v463
  %469 = vst [vmem:[%s5] sm:$0xff] %v465
  %470 = vst [vmem:[%s5 + $0x8] sm:$0xff] %v466
  %471 = vst [vmem:[%s5 + $0x10] sm:$0xff] %v467
  %472 = vst [vmem:[%s5 + $0x18] sm:$0xff] %v468
  // Predicated region
  $region22: #{watermark_encoder.1} parent=0 // pred_check
    _
  $region23: #{watermark_encoder.1} parent=0 // pred_check_branch
    %474 = sbr.rel (0) target = $region25
  $region24: #{watermark_encoder.1} parent=0 // pred_region
    _
  $region25: #{watermark_encoder.1} parent=0 // pred_fallthru
    _
  // Predicated region
  $region26: #{watermark_encoder.1} parent=0 // pred_check
    _
  $region27: #{watermark_encoder.1} parent=0 // pred_check_branch
    %476 = sbr.rel (0) target = $region29
  $region28: #{watermark_encoder.1} parent=0 // pred_region
    _
  $region29: #{watermark_encoder.1} parent=0 // pred_fallthru
    _

</llo_original>
